<compile_context>
chip_gen: v7x
topology: tpu7x:2x2x1
jax: 0.10.0
libtpu: 0.0.40
codegen_flags: <defaults>
</compile_context>

<pallas_src>
import functools

import jax
import jax.numpy as jnp
from jax.experimental import pallas as pl
from jax.experimental.pallas import tpu as pltpu


def _leaky_relu(v, negative_slope):
    return jnp.where(v >= 0, v, negative_slope * v)


def _tap_stack(h):
    """Build the (3*C, T) RHS for a k=3 'same' conv expressed as one matmul.

    Row blocks (matching the [W[:,:,0] | W[:,:,1] | W[:,:,2]] weight concat):
      block 0: h shifted right by 1 (value at t-1, zero at t=0)
      block 1: h
      block 2: h shifted left by 1  (value at t+1, zero at t=T-1)
    """
    c = h.shape[0]
    zero_col = jnp.zeros((c, 1), h.dtype)
    prev = jnp.concatenate([zero_col, h[:, :-1]], axis=1)
    nxt = jnp.concatenate([h[:, 1:], zero_col], axis=1)
    return jnp.concatenate([prev, h, nxt], axis=0)


def resblk1d_kernel(x_ref, w1_ref, b1_ref, w2_ref, b2_ref, o_ref, *,
                    t_real, negative_slope, out_scale):
    # x_ref:  (1, C_in, T_pad)
    # w1_ref: (C_mid, 3*C_in)            (conv1 taps concatenated along K)
    # b1_ref: (C_mid, 1)
    # w2_ref: (C_out, 3*C_mid + C_in)    (conv2 taps + shortcut weight along K)
    # b2_ref: (C_out, 1)
    # o_ref:  (1, C_out, T_pad)
    x = x_ref[0].astype(jnp.float32)                  # (C_in, T_pad)
    t_pad = x.shape[-1]

    # --- residual branch, conv1 ---
    a1 = _leaky_relu(x, negative_slope)
    r1 = _tap_stack(a1)                               # (3*C_in, T_pad)
    h = jnp.dot(w1_ref[...], r1, preferred_element_type=jnp.float32) + b1_ref[...]

    # Preserve PyTorch's implicit zero-padding semantics of conv2 at the true sequence
    # end: columns >= t_real of the intermediate must behave like zeros.
    if t_real < t_pad:  # static (T_pad known at trace time)
        col = jax.lax.broadcasted_iota(jnp.int32, h.shape, 1)
        h = jnp.where(col < t_real, h, 0.0)

    # --- residual branch conv2, fused with the 1x1 shortcut ---
    a2 = _leaky_relu(h, negative_slope)
    r2 = jnp.concatenate([_tap_stack(a2), x], axis=0)  # (3*C_mid + C_in, T_pad)
    y = jnp.dot(w2_ref[...], r2, preferred_element_type=jnp.float32) + b2_ref[...]

    o_ref[0] = (y * out_scale).astype(o_ref.dtype)


def resblk1d_forward(x, w1, b1, w2, b2, w_shortcut=None, *, negative_slope=0.2):
    """Fused ResBlk1d forward.

    x:          (B, C_in, T)
    w1:         (C_mid, C_in, 3)   effective (post weight-norm) conv1 weight
    b1:         (C_mid,)
    w2:         (C_out, C_mid, 3)  effective conv2 weight
    b2:         (C_out,)
    w_shortcut: (C_out, C_in) effective 1x1 shortcut weight, or None for identity
                (requires C_in == C_out).
    """
    B, c_in, T = x.shape
    c_mid = w1.shape[0]
    c_out = w2.shape[0]

    if w_shortcut is None:
        assert c_in == c_out, "identity shortcut requires dim_in == dim_out"
        w_shortcut = jnp.eye(c_out, dtype=jnp.float32)

    # Lane-dense padding of the time axis (multiple of 128).
    t_pad = max(128, ((T + 127) // 128) * 128)
    x_p = jnp.pad(x, ((0, 0), (0, 0), (0, t_pad - T))) if t_pad != T else x

    # Fold conv taps (and the shortcut) into single matmul weights.
    w1_cat = jnp.concatenate([w1[:, :, 0], w1[:, :, 1], w1[:, :, 2]], axis=1)
    w2_cat = jnp.concatenate(
        [w2[:, :, 0], w2[:, :, 1], w2[:, :, 2], w_shortcut], axis=1)
    b1_col = b1.reshape(c_mid, 1).astype(jnp.float32)
    b2_col = b2.reshape(c_out, 1).astype(jnp.float32)

    kernel = functools.partial(
        resblk1d_kernel,
        t_real=T,
        negative_slope=negative_slope,
        out_scale=float(0.5 ** 0.5),
    )

    out_p = pl.pallas_call(
        kernel,
        out_shape=jax.ShapeDtypeStruct((B, c_out, t_pad), x.dtype),
        grid=(B,),
        in_specs=[
            pl.BlockSpec((1, c_in, t_pad), lambda b: (b, 0, 0)),
            pl.BlockSpec((c_mid, 3 * c_in), lambda b: (0, 0)),
            pl.BlockSpec((c_mid, 1), lambda b: (0, 0)),
            pl.BlockSpec((c_out, 3 * c_mid + c_in), lambda b: (0, 0)),
            pl.BlockSpec((c_out, 1), lambda b: (0, 0)),
        ],
        out_specs=pl.BlockSpec((1, c_out, t_pad), lambda b: (b, 0, 0)),
        compiler_params=pltpu.CompilerParams(dimension_semantics=("parallel",)),
    )(x_p, w1_cat, b1_col, w2_cat, b2_col)

    return out_p[:, :, :T]


def weight_norm_effective(v, g):
    """weight_norm (dim=0): w = g * v / ||v||, norm over all non-output dims."""
    reduce_axes = tuple(range(1, v.ndim))
    norm = jnp.sqrt(jnp.sum(v * v, axis=reduce_axes, keepdims=True))
    g_shape = (v.shape[0],) + (1,) * (v.ndim - 1)
    return v * (g.reshape(g_shape) / norm)


def ref_resblk1d(x, w1, b1, w2, b2, w_shortcut, negative_slope=0.2):
    """Plain-JAX reference matching the PyTorch forward (eval mode, normalize=False)."""
    def lrelu(v):
        return jnp.where(v >= 0, v, negative_slope * v)

    def conv1d_same(v, w, b):
        out = jax.lax.conv_general_dilated(
            v, w, window_strides=(1,), padding=((1, 1),),
            dimension_numbers=("NCH", "OIH", "NCH"))
        return out + b[None, :, None]

    h = conv1d_same(lrelu(x), w1, b1)
    y = conv1d_same(lrelu(h), w2, b2)
    sc = jnp.einsum("oc,bct->bot", w_shortcut, x)
    return (y + sc) * (0.5 ** 0.5)


if __name__ == "__main__":
    key = jax.random.PRNGKey(0)
    ks = jax.random.split(key, 8)

    # Small shapes consistent with the module: batch=2, dim_in=4, intermediate=8,
    # dim_out=6 (dim_in != dim_out exercises the 1x1 weight-norm shortcut), T=16.
    B, dim_in, dim_mid, dim_out, T = 2, 4, 8, 6, 16

    x = jax.random.normal(ks[0], (B, dim_in, T), jnp.float32)

    # Deterministic weight_norm parameters (direction v, magnitude g) + biases.
    v1 = jax.random.normal(ks[1], (dim_mid, dim_in, 3), jnp.float32) * 0.3
    g1 = jax.random.uniform(ks[2], (dim_mid,), jnp.float32, minval=0.5, maxval=1.5)
    b1 = jax.random.normal(ks[3], (dim_mid,), jnp.float32) * 0.1

    v2 = jax.random.normal(ks[4], (dim_out, dim_mid, 3), jnp.float32) * 0.3
    g2 = jax.random.uniform(ks[5], (dim_out,), jnp.float32, minval=0.5, maxval=1.5)
    b2 = jax.random.normal(ks[6], (dim_out,), jnp.float32) * 0.1

    v_sc = jax.random.normal(ks[7], (dim_out, dim_in, 1), jnp.float32) * 0.3
    g_sc = jnp.ones((dim_out,), jnp.float32)

    # Fold weight_norm into effective weights (forward-pass reparametrization).
    w1 = weight_norm_effective(v1, g1)                  # (dim_mid, dim_in, 3)
    w2 = weight_norm_effective(v2, g2)                  # (dim_out, dim_mid, 3)
    w_sc = weight_norm_effective(v_sc, g_sc)[:, :, 0]   # (dim_out, dim_in)

    out = resblk1d_forward(x, w1, b1, w2, b2, w_sc)
    out = jax.block_until_ready(out)

    ref = ref_resblk1d(x, w1, b1, w2, b2, w_sc)
    assert out.shape == (B, dim_out, T)
    assert jnp.allclose(out, ref, atol=1e-5, rtol=1e-5), \
        f"max abs err = {jnp.max(jnp.abs(out - ref))}"

    print("KERNEL_OK")
</pallas_src>

<mosaic_0001>
module attributes {stable_mosaic.version = 11 : i64} {
  func.func @resblk1d_kernel(%arg0: i32, %arg1: memref<1x4x128xf32, #tpu.memory_space<vmem>>, %arg2: memref<8x12xf32, #tpu.memory_space<vmem>>, %arg3: memref<8x1xf32, #tpu.memory_space<vmem>>, %arg4: memref<6x28xf32, #tpu.memory_space<vmem>>, %arg5: memref<6x1xf32, #tpu.memory_space<vmem>>, %arg6: memref<1x6x128xf32, #tpu.memory_space<vmem>>) attributes {dimension_semantics = [#tpu.dimension_semantics<parallel>], iteration_bounds = array<i64: 2>, scalar_prefetch = 0 : i64, scratch_operands = 0 : i64, tpu.core_type = #tpu.core_type<tc>, window_params = [{transform_indices = @transform_0, window_bounds = array<i64: 1, 4, 128>}, {pipeline_mode = #tpu.pipeline_mode<synchronous>, transform_indices = @transform_1, window_bounds = array<i64: 8, 12>}, {pipeline_mode = #tpu.pipeline_mode<synchronous>, transform_indices = @transform_2, window_bounds = array<i64: 8, 1>}, {pipeline_mode = #tpu.pipeline_mode<synchronous>, transform_indices = @transform_3, window_bounds = array<i64: 6, 28>}, {pipeline_mode = #tpu.pipeline_mode<synchronous>, transform_indices = @transform_4, window_bounds = array<i64: 6, 1>}, {transform_indices = @transform_5, window_bounds = array<i64: 1, 6, 128>}]} {
    %c0 = arith.constant 0 : index
    %c0_0 = arith.constant 0 : index
    %c0_1 = arith.constant 0 : index
    %0 = vector.load %arg1[%c0, %c0_0, %c0_1] : memref<1x4x128xf32, #tpu.memory_space<vmem>>, vector<1x4x128xf32>
    %1 = vector.shape_cast %0 : vector<1x4x128xf32> to vector<4x128xf32>
    %cst = arith.constant 0.000000e+00 : f32
    %2 = vector.broadcast %cst : f32 to vector<4x128xf32>
    %3 = arith.cmpf oge, %1, %2 : vector<4x128xf32>
    %cst_2 = arith.constant 2.000000e-01 : f32
    %4 = vector.broadcast %cst_2 : f32 to vector<4x128xf32>
    %5 = arith.mulf %4, %1 : vector<4x128xf32>
    %6 = arith.select %3, %1, %5 : vector<4x128xi1>, vector<4x128xf32>
    %cst_3 = arith.constant 0.000000e+00 : f32
    %7 = vector.broadcast %cst_3 : f32 to vector<4x1xf32>
    %8 = vector.extract_strided_slice %6 {offsets = [0, 0], sizes = [4, 127], strides = [1, 1]} : vector<4x128xf32> to vector<4x127xf32>
    %9 = tpu.concatenate %7, %8 in 1 : vector<4x1xf32>, vector<4x127xf32> -> vector<4x128xf32>
    %10 = vector.extract_strided_slice %6 {offsets = [0, 1], sizes = [4, 127], strides = [1, 1]} : vector<4x128xf32> to vector<4x127xf32>
    %11 = tpu.concatenate %10, %7 in 1 : vector<4x127xf32>, vector<4x1xf32> -> vector<4x128xf32>
    %12 = tpu.concatenate %9, %6, %11 in 0 : vector<4x128xf32>, vector<4x128xf32>, vector<4x128xf32> -> vector<12x128xf32>
    %c0_4 = arith.constant 0 : index
    %c0_5 = arith.constant 0 : index
    %13 = vector.load %arg2[%c0_4, %c0_5] : memref<8x12xf32, #tpu.memory_space<vmem>>, vector<8x12xf32>
    %cst_6 = arith.constant dense<0.000000e+00> : vector<8x128xf32>
    %14 = tpu.matmul %13, %12, %cst_6 {dimension_numbers = #tpu.dot_dimension_numbers<[1], [0], [0], [1], [0, 0, 1, 1], [], []>} : vector<8x12xf32>, vector<12x128xf32>, vector<8x128xf32> -> vector<8x128xf32>
    %c0_7 = arith.constant 0 : index
    %c0_8 = arith.constant 0 : index
    %15 = vector.load %arg3[%c0_7, %c0_8] : memref<8x1xf32, #tpu.memory_space<vmem>>, vector<8x1xf32>
    %16 = vector.broadcast %15 : vector<8x1xf32> to vector<8x128xf32>
    %17 = arith.addf %14, %16 : vector<8x128xf32>
    %18 = tpu.iota {dimensions = array<i32: 1>} : vector<8x128xi32>
    %c16_i32 = arith.constant 16 : i32
    %19 = vector.broadcast %c16_i32 : i32 to vector<8x128xi32>
    %20 = arith.cmpi slt, %18, %19 : vector<8x128xi32>
    %cst_9 = arith.constant 0.000000e+00 : f32
    %21 = vector.broadcast %cst_9 : f32 to vector<8x128xf32>
    %22 = arith.select %20, %17, %21 : vector<8x128xi1>, vector<8x128xf32>
    %cst_10 = arith.constant 0.000000e+00 : f32
    %23 = vector.broadcast %cst_10 : f32 to vector<8x128xf32>
    %24 = arith.cmpf oge, %22, %23 : vector<8x128xf32>
    %cst_11 = arith.constant 2.000000e-01 : f32
    %25 = vector.broadcast %cst_11 : f32 to vector<8x128xf32>
    %26 = arith.mulf %25, %22 : vector<8x128xf32>
    %27 = arith.select %24, %22, %26 : vector<8x128xi1>, vector<8x128xf32>
    %cst_12 = arith.constant 0.000000e+00 : f32
    %28 = vector.broadcast %cst_12 : f32 to vector<8x1xf32>
    %29 = vector.extract_strided_slice %27 {offsets = [0, 0], sizes = [8, 127], strides = [1, 1]} : vector<8x128xf32> to vector<8x127xf32>
    %30 = tpu.concatenate %28, %29 in 1 : vector<8x1xf32>, vector<8x127xf32> -> vector<8x128xf32>
    %31 = vector.extract_strided_slice %27 {offsets = [0, 1], sizes = [8, 127], strides = [1, 1]} : vector<8x128xf32> to vector<8x127xf32>
    %32 = tpu.concatenate %31, %28 in 1 : vector<8x127xf32>, vector<8x1xf32> -> vector<8x128xf32>
    %33 = tpu.concatenate %30, %27, %32 in 0 : vector<8x128xf32>, vector<8x128xf32>, vector<8x128xf32> -> vector<24x128xf32>
    %34 = tpu.concatenate %33, %1 in 0 : vector<24x128xf32>, vector<4x128xf32> -> vector<28x128xf32>
    %c0_13 = arith.constant 0 : index
    %c0_14 = arith.constant 0 : index
    %35 = vector.load %arg4[%c0_13, %c0_14] : memref<6x28xf32, #tpu.memory_space<vmem>>, vector<6x28xf32>
    %cst_15 = arith.constant dense<0.000000e+00> : vector<6x128xf32>
    %36 = tpu.matmul %35, %34, %cst_15 {dimension_numbers = #tpu.dot_dimension_numbers<[1], [0], [0], [1], [0, 0, 1, 1], [], []>} : vector<6x28xf32>, vector<28x128xf32>, vector<6x128xf32> -> vector<6x128xf32>
    %c0_16 = arith.constant 0 : index
    %c0_17 = arith.constant 0 : index
    %37 = vector.load %arg5[%c0_16, %c0_17] : memref<6x1xf32, #tpu.memory_space<vmem>>, vector<6x1xf32>
    %38 = vector.broadcast %37 : vector<6x1xf32> to vector<6x128xf32>
    %39 = arith.addf %36, %38 : vector<6x128xf32>
    %cst_18 = arith.constant 0.707106769 : f32
    %40 = vector.broadcast %cst_18 : f32 to vector<6x128xf32>
    %41 = arith.mulf %39, %40 : vector<6x128xf32>
    %c0_19 = arith.constant 0 : index
    %c0_20 = arith.constant 0 : index
    %c0_21 = arith.constant 0 : index
    %42 = vector.load %arg6[%c0_19, %c0_20, %c0_21] : memref<1x6x128xf32, #tpu.memory_space<vmem>>, vector<1x6x128xf32>
    %43 = vector.shape_cast %42 : vector<1x6x128xf32> to vector<6x128xf32>
    %44 = vector.shape_cast %41 : vector<6x128xf32> to vector<1x6x128xf32>
    tpu.vector_store %arg6[%c0_19, %c0_20, %c0_21], %44 {strides = array<i32>} : memref<1x6x128xf32, #tpu.memory_space<vmem>>, vector<1x6x128xf32>,
    return
  }
  func.func @transform_0(%arg0: i32) -> (i32, i32, i32) {
    %c0_i32 = arith.constant 0 : i32
    %c0_i32_0 = arith.constant 0 : i32
    %c0_i32_1 = arith.constant 0 : i32
    return %arg0, %c0_i32, %c0_i32_0 : i32, i32, i32
  }
  func.func @transform_1(%arg0: i32) -> (i32, i32) {
    %c0_i32 = arith.constant 0 : i32
    %c0_i32_0 = arith.constant 0 : i32
    %c0_i32_1 = arith.constant 0 : i32
    return %c0_i32, %c0_i32_0 : i32, i32
  }
  func.func @transform_2(%arg0: i32) -> (i32, i32) {
    %c0_i32 = arith.constant 0 : i32
    %c0_i32_0 = arith.constant 0 : i32
    %c0_i32_1 = arith.constant 0 : i32
    return %c0_i32, %c0_i32_0 : i32, i32
  }
  func.func @transform_3(%arg0: i32) -> (i32, i32) {
    %c0_i32 = arith.constant 0 : i32
    %c0_i32_0 = arith.constant 0 : i32
    %c0_i32_1 = arith.constant 0 : i32
    return %c0_i32, %c0_i32_0 : i32, i32
  }
  func.func @transform_4(%arg0: i32) -> (i32, i32) {
    %c0_i32 = arith.constant 0 : i32
    %c0_i32_0 = arith.constant 0 : i32
    %c0_i32_1 = arith.constant 0 : i32
    return %c0_i32, %c0_i32_0 : i32, i32
  }
  func.func @transform_5(%arg0: i32) -> (i32, i32, i32) {
    %c0_i32 = arith.constant 0 : i32
    %c0_i32_0 = arith.constant 0 : i32
    %c0_i32_1 = arith.constant 0 : i32
    return %arg0, %c0_i32, %c0_i32_0 : i32, i32, i32
  }
}

</mosaic_0001>

<llo_original>
// kernel: tpu_custom_call.1
$region0: #{tpu_custom_call.1}
  #allocation0 [shape = 'u32[]', space=smem, size = 0x4, offset = 0x4, fixed_abs, tag = 'smem constant byte address 0x4 - core index']
  #allocation1 [shape = 'u32[144,128]{1,0:T(1,128)}', space=vmem, size = 0x12000, scoped, tag = 'internal scratch']
  %s0 = inlined_call_operand.vmem [shape: f32[2,4,128], index: 0, kind: input, shape index: {}]
  %s1 = inlined_call_operand.vmem [shape: f32[8,12], index: 1, kind: input, shape index: {}]
  %s2 = inlined_call_operand.vmem [shape: f32[8,1], index: 2, kind: input, shape index: {}]
  %s3 = inlined_call_operand.vmem [shape: f32[6,28], index: 3, kind: input, shape index: {}]
  %s4 = inlined_call_operand.vmem [shape: f32[6,1], index: 4, kind: input, shape index: {}]
  %s5 = inlined_call_operand.vmem [shape: f32[2,6,128], index: 5, kind: output, shape index: {}]
  %s6 = sld [smem:[#allocation0]]
  $region53: #{tpu_custom_call.1} parent=0
    _
  %s8 = ssub.s32 1, %s6
  %s9 = scalar_select 0, %s8, %s6
  loop: start=0, step=1, limit=4
  $region2: #{tpu_custom_call.1} parent=0 // loop_pre_header
    _
  $region3: #{tpu_custom_call.1} parent=0 // loop_header
    %s11 = sphi 0, %s15
    %p12 = scmp.ge.s32.totalorder %s11, 4
    %s21 = sphi 0, %s23
    %s24 = sphi 0, %s21
    %s25 = sphi 0, %s24
    %s41 = sphi 0, %s25
    %s45 = sphi 0, %s45
    %s47 = sphi 0, %s45
    %s48 = sphi 0, %s47
    %s62 = sphi 0, %s48
    %s66 = sphi 0, %s66
    %s68 = sphi 0, %s66
    %s69 = sphi 0, %s68
    %s83 = sphi 0, %s69
    %s87 = sphi 0, %s87
    %s89 = sphi 0, %s87
    %s90 = sphi 0, %s89
    %s104 = sphi 0, %s90
    %s108 = sphi 0, %s108
    %s110 = sphi 0, %s108
    %s111 = sphi 0, %s110
    %s125 = sphi 0, %s111
    %s131 = sphi 0, %s133
    %s134 = sphi 0, %s131
    %s135 = sphi 0, %s134
    %s151 = sphi 0, %s135
  $region4: #{tpu_custom_call.1} parent=0 // loop_header_branch
    %14 = sbr.rel (%p12) target = $region8
  $region5: #{tpu_custom_call.1} parent=0 // loop_body
    %s16 = ssub.s32 %s11, 1
    %s17 = ssub.s32 %s11, 2
    %s18 = sadd.s32 %s11, 1
    %s19 = ssub.s32 %s11, %s18
    %p20 = scmp.eq.s32.totalorder %s19, 0
    %s22 = sadd.s32 %s21, 1
    %s23 = scalar_select %p20, %s21, %s22
    %p26 = pneg %p20
    %p27 = scmp.eq.s32.totalorder %s11, 1
    %p28 = por %p26, %p27
    %p29 = scmp.ne.s32.totalorder %s21, %s24
    %p30 = scmp.eq.s32.totalorder %s11, 0
    %p31 = por %p29, %p30
    %p32 = scmp.ne.s32.totalorder %s21, %s24
    %p33 = scmp.eq.s32.totalorder %s16, 1
    %p34 = por %p32, %p33
    %p35 = scmp.ne.s32.totalorder %s24, %s25
    %p36 = scmp.eq.s32.totalorder %s16, 0
    %p37 = por %p35, %p36
    %p38 = scmp.ne.s32.totalorder %s24, %s25
    %p39 = scmp.eq.s32.totalorder %s17, 1
    %p40 = por %p38, %p39
    %p42 = scmp.ne.s32.totalorder %s25, %s41
    %p43 = scmp.eq.s32.totalorder %s17, 0
    %p44 = por %p42, %p43
    %s46 = sadd.s32 %s45, 1
    %p49 = scmp.eq.s32.totalorder %s11, 1
    %p50 = scmp.ne.s32.totalorder %s45, %s47
    %p51 = scmp.eq.s32.totalorder %s11, 0
    %p52 = por %p50, %p51
    %p53 = scmp.ne.s32.totalorder %s45, %s47
    %p54 = scmp.eq.s32.totalorder %s16, 1
    %p55 = por %p53, %p54
    %p56 = scmp.ne.s32.totalorder %s47, %s48
    %p57 = scmp.eq.s32.totalorder %s16, 0
    %p58 = por %p56, %p57
    %p59 = scmp.ne.s32.totalorder %s47, %s48
    %p60 = scmp.eq.s32.totalorder %s17, 1
    %p61 = por %p59, %p60
    %p63 = scmp.ne.s32.totalorder %s48, %s62
    %p64 = scmp.eq.s32.totalorder %s17, 0
    %p65 = por %p63, %p64
    %s67 = sadd.s32 %s66, 1
    %p70 = scmp.eq.s32.totalorder %s11, 1
    %p71 = scmp.ne.s32.totalorder %s66, %s68
    %p72 = scmp.eq.s32.totalorder %s11, 0
    %p73 = por %p71, %p72
    %p74 = scmp.ne.s32.totalorder %s66, %s68
    %p75 = scmp.eq.s32.totalorder %s16, 1
    %p76 = por %p74, %p75
    %p77 = scmp.ne.s32.totalorder %s68, %s69
    %p78 = scmp.eq.s32.totalorder %s16, 0
    %p79 = por %p77, %p78
    %p80 = scmp.ne.s32.totalorder %s68, %s69
    %p81 = scmp.eq.s32.totalorder %s17, 1
    %p82 = por %p80, %p81
    %p84 = scmp.ne.s32.totalorder %s69, %s83
    %p85 = scmp.eq.s32.totalorder %s17, 0
    %p86 = por %p84, %p85
    %s88 = sadd.s32 %s87, 1
    %p91 = scmp.eq.s32.totalorder %s11, 1
    %p92 = scmp.ne.s32.totalorder %s87, %s89
    %p93 = scmp.eq.s32.totalorder %s11, 0
    %p94 = por %p92, %p93
    %p95 = scmp.ne.s32.totalorder %s87, %s89
    %p96 = scmp.eq.s32.totalorder %s16, 1
    %p97 = por %p95, %p96
    %p98 = scmp.ne.s32.totalorder %s89, %s90
    %p99 = scmp.eq.s32.totalorder %s16, 0
    %p100 = por %p98, %p99
    %p101 = scmp.ne.s32.totalorder %s89, %s90
    %p102 = scmp.eq.s32.totalorder %s17, 1
    %p103 = por %p101, %p102
    %p105 = scmp.ne.s32.totalorder %s90, %s104
    %p106 = scmp.eq.s32.totalorder %s17, 0
    %p107 = por %p105, %p106
    %s109 = sadd.s32 %s108, 1
    %p112 = scmp.eq.s32.totalorder %s11, 1
    %p113 = scmp.ne.s32.totalorder %s108, %s110
    %p114 = scmp.eq.s32.totalorder %s11, 0
    %p115 = por %p113, %p114
    %p116 = scmp.ne.s32.totalorder %s108, %s110
    %p117 = scmp.eq.s32.totalorder %s16, 1
    %p118 = por %p116, %p117
    %p119 = scmp.ne.s32.totalorder %s110, %s111
    %p120 = scmp.eq.s32.totalorder %s16, 0
    %p121 = por %p119, %p120
    %p122 = scmp.ne.s32.totalorder %s110, %s111
    %p123 = scmp.eq.s32.totalorder %s17, 1
    %p124 = por %p122, %p123
    %p126 = scmp.ne.s32.totalorder %s111, %s125
    %p127 = scmp.eq.s32.totalorder %s17, 0
    %p128 = por %p126, %p127
    %s129 = ssub.s32 %s11, %s18
    %p130 = scmp.eq.s32.totalorder %s129, 0
    %s132 = sadd.s32 %s131, 1
    %s133 = scalar_select %p130, %s131, %s132
    %p136 = pneg %p130
    %p137 = scmp.eq.s32.totalorder %s11, 1
    %p138 = por %p136, %p137
    %p139 = scmp.ne.s32.totalorder %s131, %s134
    %p140 = scmp.eq.s32.totalorder %s11, 0
    %p141 = por %p139, %p140
    %p142 = scmp.ne.s32.totalorder %s131, %s134
    %p143 = scmp.eq.s32.totalorder %s16, 1
    %p144 = por %p142, %p143
    %p145 = scmp.ne.s32.totalorder %s134, %s135
    %p146 = scmp.eq.s32.totalorder %s16, 0
    %p147 = por %p145, %p146
    %p148 = scmp.ne.s32.totalorder %s134, %s135
    %p149 = scmp.eq.s32.totalorder %s17, 1
    %p150 = por %p148, %p149
    %p152 = scmp.ne.s32.totalorder %s135, %s151
    %p153 = scmp.eq.s32.totalorder %s17, 0
    %p154 = por %p152, %p153
    %p155 = scmp.le.s32.totalorder 1, %s11
    %p156 = scmp.lt.s32.totalorder %s11, 3
    %p157 = pnand %p155, %p156
    %p158 = pneg %p157
    // Predicated region
    $region9: #{tpu_custom_call.1} parent=5 // pred_check
      _
    $region10: #{tpu_custom_call.1} parent=5 // pred_check_branch
      %160 = sbr.rel (%p157) target = $region12
    $region11: #{tpu_custom_call.1} parent=5 // pred_region
      %s161 = ssub.s32 %s11, 1
      // Predicated region
      $region13: #{tpu_custom_call.1} parent=11 // pred_check
        %p162 = pneg %p58
      $region14: #{tpu_custom_call.1} parent=11 // pred_check_branch
        %164 = sbr.rel (%p162) target = $region16
      $region15: #{tpu_custom_call.1} parent=11 // pred_region
        _
      $region16: #{tpu_custom_call.1} parent=11 // pred_fallthru
        _
      // Predicated region
      $region17: #{tpu_custom_call.1} parent=11 // pred_check
        %p165 = pneg %p79
      $region18: #{tpu_custom_call.1} parent=11 // pred_check_branch
        %167 = sbr.rel (%p165) target = $region20
      $region19: #{tpu_custom_call.1} parent=11 // pred_region
        _
      $region20: #{tpu_custom_call.1} parent=11 // pred_fallthru
        _
      // Predicated region
      $region21: #{tpu_custom_call.1} parent=11 // pred_check
        %p168 = pneg %p100
      $region22: #{tpu_custom_call.1} parent=11 // pred_check_branch
        %170 = sbr.rel (%p168) target = $region24
      $region23: #{tpu_custom_call.1} parent=11 // pred_region
        _
      $region24: #{tpu_custom_call.1} parent=11 // pred_fallthru
        _
      // Predicated region
      $region25: #{tpu_custom_call.1} parent=11 // pred_check
        %p171 = pneg %p121
      $region26: #{tpu_custom_call.1} parent=11 // pred_check_branch
        %173 = sbr.rel (%p171) target = $region28
      $region27: #{tpu_custom_call.1} parent=11 // pred_region
        _
      $region28: #{tpu_custom_call.1} parent=11 // pred_fallthru
        _
    $region12: #{tpu_custom_call.1} parent=5 // pred_fallthru
      _
    %p174 = scmp.lt.s32.totalorder %s11, 2
    // Predicated region
    $region29: #{tpu_custom_call.1} parent=5 // pred_check
      %p175 = pneg %p174
    $region30: #{tpu_custom_call.1} parent=5 // pred_check_branch
      %177 = sbr.rel (%p175) target = $region32
    $region31: #{tpu_custom_call.1} parent=5 // pred_region
      // Predicated region
      $region33: #{tpu_custom_call.1} parent=31 // pred_check
        %p178 = pneg %p31
      $region34: #{tpu_custom_call.1} parent=31 // pred_check_branch
        %180 = sbr.rel (%p178) target = $region36
      $region35: #{tpu_custom_call.1} parent=31 // pred_region
        %p181 = scmp.lt.s32.totalorder %s11, 1
        %s182 = scalar_select %p181, %s11, 1
        %s183 = smul.addr %s182, 4
        %s184 = scalar_lea.vmem %s0, %s183
      $region36: #{tpu_custom_call.1} parent=31 // pred_fallthru
        _
    $region32: #{tpu_custom_call.1} parent=5 // pred_fallthru
      _
    %p185 = scmp.le.s32.totalorder 1, %s11
    %p186 = scmp.lt.s32.totalorder %s11, 3
    %p187 = pnand %p185, %p186
    %p188 = pneg %p187
    // Predicated region
    $region37: #{tpu_custom_call.1} parent=5 // pred_check
      _
    $region38: #{tpu_custom_call.1} parent=5 // pred_check_branch
      %190 = sbr.rel (%p187) target = $region40
    $region39: #{tpu_custom_call.1} parent=5 // pred_region
      %s191 = ssub.s32 %s11, 1
      %p192 = scmp.lt.s32.totalorder %s16, 1
      %s193 = scalar_select %p192, %s16, 1
      %s194 = smul.addr %s193, 4
      %s195 = scalar_lea.vmem %s0, %s194
      %p196 = pneg %p37
      %p197 = pneg %p34
      %p198 = pneg %p58
      %p199 = pneg %p55
      %p200 = pneg %p79
      %p201 = pneg %p76
      %p202 = pneg %p100
      %p203 = pneg %p97
      %p204 = pneg %p121
      %p205 = pneg %p118
      %p206 = pneg %p147
      %p207 = pneg %p144
      %p208 = scmp.lt.s32.totalorder %s16, 1
      %s209 = scalar_select %p208, %s16, 1
      %s210 = smul.addr %s209, 8
      %s211 = scalar_lea.vmem %s5, %s210
      %p212 = scmp.lt.s32.totalorder %s16, 1
      %s213 = scalar_select %p212, %s16, 1
      %s214 = smul.addr %s213, 4
      %s215 = scalar_lea.vmem %s0, %s214
      %p216 = scmp.lt.s32.totalorder %s16, 1
      %s217 = scalar_select %p216, %s16, 1
      %s218 = smul.addr %s217, 8
      %s219 = scalar_lea.vmem %s5, %s218
      %v220 = vld [vmem:[%s215] sm:$0xf]
      %vm221 = vcmp.ge.f32.partialorder %v220, 0.0
      %v222 = vmul.f32 %v220, 0.2
      %v223 = vsel %vm221, %v220, %v222
      %225 = vrot.lane.b32.xlu0 %v223, 1
      %v226 = vpop.permute.xlu0 %225
      %vm228 = vcmask 7168
      %v229 = vsel %vm228, 0.0, %v226
      %230 = vrot.lane.b32.xlu0 %v223, 127
      %v231 = vpop.permute.xlu0 %230
      %vm233 = vcmask 1039360
      %v234 = vsel %vm233, %v231, 0.0
      %v235 = vrot.slane %v223, 4
      %vm237 = vcmask 1043456
      %v238 = vsel %vm237, %v229, %v235
      %v239 = vld [vmem:[%s1] sm:$0xff]
      %v240 = vld [vmem:[%s2] sm:$0xff]
      %242 = vset.pattern.permute.xlu0 0
      %243 = vperm.xlu0 %242, %v240
      %v244 = vpop.permute.xlu0 %243
      %vm246 = vcmask 97280
      %v248 = vsel %vm246, %v239, 0
      %v251 = vsel %vm237, %v234, 0
      %253 = vmatprep.subr.mxu0 0.0
      %254 = vmatpush1.msra.mxu0 %v238
      %255 = vmatprep.subr.mxu0 0.0
      %256 = vmatpush1.msra.mxu0 %v251
      %257 = vmatprep.subr.mxu0 0.0
      %258 = vmatpush1.msra.mxu0 0.0
      %259 = vmatprep.subr.mxu0 0.0
      %260 = vmatpush1.msra.mxu0 0.0
      %261 = vmatprep.subr.mxu0 0.0
      %262 = vmatpush1.msra.mxu0 0.0
      %263 = vmatprep.subr.mxu0 0.0
      %264 = vmatpush1.msra.mxu0 0.0
      %265 = vmatprep.subr.mxu0 0.0
      %266 = vmatpush1.msra.mxu0 0.0
      %267 = vmatprep.subr.mxu0 0.0
      %268 = vmatpush1.msra.mxu0 0.0
      %269 = vmatprep.subr.mxu0 0.0
      %270 = vmatpush1.msra.mxu0 0.0
      %271 = vmatprep.subr.mxu0 0.0
      %272 = vmatpush1.msra.mxu0 0.0
      %273 = vmatprep.subr.mxu0 0.0
      %274 = vmatpush1.msra.mxu0 0.0
      %275 = vmatprep.subr.mxu0 0.0
      %276 = vmatpush1.msra.mxu0 0.0
      %277 = vmatprep.subr.mxu0 0.0
      %278 = vmatpush1.msra.mxu0 0.0
      %279 = vmatprep.subr.mxu0 0.0
      %280 = vmatpush1.msra.mxu0 0.0
      %281 = vmatprep.subr.mxu0 0.0
      %282 = vmatpush1.msra.mxu0 0.0
      %283 = vmatprep.subr.mxu0 0.0
      %284 = vmatpush1.msra.mxu0 0.0
      %285 = vmatprep.subr.mxu0 0.0
      %286 = vmatpush1.msra.mxu0 0.0
      %287 = vmatprep.subr.mxu0 0.0
      %288 = vmatpush1.msra.mxu0 0.0
      %289 = vmatprep.subr.mxu0 0.0
      %290 = vmatpush1.msra.mxu0 0.0
      %291 = vmatprep.subr.mxu0 0.0
      %292 = vmatpush1.msra.mxu0 0.0
      %293 = vmatprep.subr.mxu0 0.0
      %294 = vmatpush1.msra.mxu0 0.0
      %295 = vmatprep.subr.mxu0 0.0
      %296 = vmatpush1.msra.mxu0 0.0
      %297 = vmatprep.subr.mxu0 0.0
      %298 = vmatpush1.msra.mxu0 0.0
      %299 = vmatprep.subr.mxu0 0.0
      %300 = vmatpush1.msra.mxu0 0.0
      %301 = vmatprep.subr.mxu0 0.0
      %302 = vmatpush1.msra.mxu0 0.0
      %303 = vmatprep.subr.mxu0 0.0
      %304 = vmatpush1.msra.mxu0 0.0
      %305 = vmatprep.subr.mxu0 0.0
      %306 = vmatpush1.msra.mxu0 0.0
      %307 = vmatprep.subr.mxu0 0.0
      %308 = vmatpush1.msra.mxu0 0.0
      %309 = vmatprep.subr.mxu0 0.0
      %310 = vmatpush1.msra.mxu0 0.0
      %311 = vmatprep.subr.mxu0 0.0
      %312 = vmatpush1.msra.mxu0 0.0
      %313 = vmatprep.subr.mxu0 0.0
      %314 = vmatpush1.msra.mxu0 0.0
      %315 = vmatprep.subr.mxu0 0.0
      %316 = vmatpush1.msra.mxu0 0.0
      %317 = vmatprep.mubr.f32.mxu0 0.0
      %318 = vmatmul.mubr.f32.gmra.mrb[0].mxu0 %v248
      %v319 = vpop.f32.mrb[0].mxu0
      %v320 = vadd.f32 %v244, %v319
      %v321 = vpop.f32.mrb[0].mxu0
      %322 = vdwg.mxu0
      %v323 = vlaneseq
      %v324 = vand.u32 %v323, 127
      %vm325 = vcmp.lt.s32.totalorder %v324, 16
      %v326 = vsel %vm325, %v320, 0.0
      %vm327 = vcmp.ge.f32.partialorder %v326, 0.0
      %v328 = vmul.f32 %v326, 0.2
      %v329 = vsel %vm327, %v326, %v328
      %331 = vrot.lane.b32.xlu0 %v329, 1
      %v332 = vpop.permute.xlu0 %331
      %v334 = vsel %vm228, 0.0, %v332
      %335 = vrot.lane.b32.xlu0 %v329, 127
      %v336 = vpop.permute.xlu0 %335
      %v338 = vsel %vm233, %v336, 0.0
      %v339 = vld [vmem:[%s3] sm:$0x3f]
      %v340 = vld [vmem:[%s4] sm:$0x3f]
      %342 = vset.pattern.permute.xlu0 0
      %343 = vperm.xlu0 %342, %v340
      %v344 = vpop.permute.xlu0 %343
      %vm346 = vcmask 228352
      %v348 = vsel %vm346, %v339, 0
      %v351 = vsel %vm237, %v220, 0
      %353 = vmatprep.subr.mxu0 0.0
      %354 = vmatpush1.msra.mxu0 %v334
      %355 = vmatprep.subr.mxu0 0.0
      %356 = vmatpush1.msra.mxu0 %v329
      %357 = vmatprep.subr.mxu0 0.0
      %358 = vmatpush1.msra.mxu0 %v338
      %359 = vmatprep.subr.mxu0 0.0
      %360 = vmatpush1.msra.mxu0 %v351
      %361 = vmatprep.subr.mxu0 0.0
      %362 = vmatpush1.msra.mxu0 0.0
      %363 = vmatprep.subr.mxu0 0.0
      %364 = vmatpush1.msra.mxu0 0.0
      %365 = vmatprep.subr.mxu0 0.0
      %366 = vmatpush1.msra.mxu0 0.0
      %367 = vmatprep.subr.mxu0 0.0
      %368 = vmatpush1.msra.mxu0 0.0
      %369 = vmatprep.subr.mxu0 0.0
      %370 = vmatpush1.msra.mxu0 0.0
      %371 = vmatprep.subr.mxu0 0.0
      %372 = vmatpush1.msra.mxu0 0.0
      %373 = vmatprep.subr.mxu0 0.0
      %374 = vmatpush1.msra.mxu0 0.0
      %375 = vmatprep.subr.mxu0 0.0
      %376 = vmatpush1.msra.mxu0 0.0
      %377 = vmatprep.subr.mxu0 0.0
      %378 = vmatpush1.msra.mxu0 0.0
      %379 = vmatprep.subr.mxu0 0.0
      %380 = vmatpush1.msra.mxu0 0.0
      %381 = vmatprep.subr.mxu0 0.0
      %382 = vmatpush1.msra.mxu0 0.0
      %383 = vmatprep.subr.mxu0 0.0
      %384 = vmatpush1.msra.mxu0 0.0
      %385 = vmatprep.subr.mxu0 0.0
      %386 = vmatpush1.msra.mxu0 0.0
      %387 = vmatprep.subr.mxu0 0.0
      %388 = vmatpush1.msra.mxu0 0.0
      %389 = vmatprep.subr.mxu0 0.0
      %390 = vmatpush1.msra.mxu0 0.0
      %391 = vmatprep.subr.mxu0 0.0
      %392 = vmatpush1.msra.mxu0 0.0
      %393 = vmatprep.subr.mxu0 0.0
      %394 = vmatpush1.msra.mxu0 0.0
      %395 = vmatprep.subr.mxu0 0.0
      %396 = vmatpush1.msra.mxu0 0.0
      %397 = vmatprep.subr.mxu0 0.0
      %398 = vmatpush1.msra.mxu0 0.0
      %399 = vmatprep.subr.mxu0 0.0
      %400 = vmatpush1.msra.mxu0 0.0
      %401 = vmatprep.subr.mxu0 0.0
      %402 = vmatpush1.msra.mxu0 0.0
      %403 = vmatprep.subr.mxu0 0.0
      %404 = vmatpush1.msra.mxu0 0.0
      %405 = vmatprep.subr.mxu0 0.0
      %406 = vmatpush1.msra.mxu0 0.0
      %407 = vmatprep.subr.mxu0 0.0
      %408 = vmatpush1.msra.mxu0 0.0
      %409 = vmatprep.subr.mxu0 0.0
      %410 = vmatpush1.msra.mxu0 0.0
      %411 = vmatprep.subr.mxu0 0.0
      %412 = vmatpush1.msra.mxu0 0.0
      %413 = vmatprep.subr.mxu0 0.0
      %414 = vmatpush1.msra.mxu0 0.0
      %415 = vmatprep.subr.mxu0 0.0
      %416 = vmatpush1.msra.mxu0 0.0
      %417 = vmatprep.mubr.f32.mxu0 0.0
      %418 = vmatmul.mubr.f32.gmra.mrb[0].mxu0 %v348
      %v419 = vpop.f32.mrb[0].mxu0
      %v420 = vadd.f32 %v344, %v419
      %v421 = vpop.f32.mrb[0].mxu0
      %422 = vdwg.mxu0
      %v423 = vmul.f32 %v420, 0.70710677
      %424 = vst [vmem:[%s219] sm:$0x3f] %v423
      %p425 = scmp.lt.s32.totalorder %s16, 1
      %s426 = scalar_select %p425, %s16, 1
      %s427 = smul.addr %s426, 8
      %s428 = scalar_lea.vmem %s5, %s427
      // Predicated region
      $region41: #{tpu_custom_call.1} parent=39 // pred_check
        %p429 = pneg %p144
      $region42: #{tpu_custom_call.1} parent=39 // pred_check_branch
        %431 = sbr.rel (%p429) target = $region44
      $region43: #{tpu_custom_call.1} parent=39 // pred_region
        _
      $region44: #{tpu_custom_call.1} parent=39 // pred_fallthru
        _
    $region40: #{tpu_custom_call.1} parent=5 // pred_fallthru
      _
    %p432 = scmp.le.s32.totalorder 2, %s11
    // Predicated region
    $region45: #{tpu_custom_call.1} parent=5 // pred_check
      %p433 = pneg %p432
    $region46: #{tpu_custom_call.1} parent=5 // pred_check_branch
      %435 = sbr.rel (%p433) target = $region48
    $region47: #{tpu_custom_call.1} parent=5 // pred_region
      %s436 = ssub.s32 %s11, 2
      // Predicated region
      $region49: #{tpu_custom_call.1} parent=47 // pred_check
        %p437 = pneg %p150
      $region50: #{tpu_custom_call.1} parent=47 // pred_check_branch
        %439 = sbr.rel (%p437) target = $region52
      $region51: #{tpu_custom_call.1} parent=47 // pred_region
        %p440 = scmp.lt.s32.totalorder %s17, 1
        %s441 = scalar_select %p440, %s17, 1
        %s442 = smul.addr %s441, 8
        %s443 = scalar_lea.vmem %s5, %s442
      $region52: #{tpu_custom_call.1} parent=47 // pred_fallthru
        _
    $region48: #{tpu_custom_call.1} parent=5 // pred_fallthru
      _
  $region6: #{tpu_custom_call.1} parent=0 // loop_footer
    %s15 = sadd.s32 1, %s11
  $region7: #{tpu_custom_call.1} parent=0 // loop_footer_branch
    %10 = sbr.rel target = $region3
  $region8: #{tpu_custom_call.1} parent=0 // loop_exit
    _

</llo_original>
